<compile_context>
chip_gen: v7x
topology: tpu7x:2x2x1
jax: 0.10.0
libtpu: 0.0.40
codegen_flags: <defaults>
</compile_context>

<pallas_src>
import math

import jax
import jax.numpy as jnp
from jax.experimental import pallas as pl
from jax.experimental.pallas import tpu as pltpu


def kan_kernel(wsum_ref, centers_ref, scale_ref, x_ref, bias_ref, o_ref):
    # x tile: (TR, L) f32.  wsum/centers/scale: (K,) f32 in SMEM.
    # bias tile: (1, L) f32, broadcast over rows.
    num_k = wsum_ref.shape[0]

    # Hoist all 3*K SMEM scalar reads (and their sreg->vreg splats) to kernel
    # entry so they are a one-time cost per tile, not per-k-per-vreg work.
    wsum = [wsum_ref[k] for k in range(num_k)]
    cent = [centers_ref[k] for k in range(num_k)]
    scal = [scale_ref[k] for k in range(num_k)]

    x = x_ref[...]
    # Two independent accumulator chains halve the K-deep serial-add path.
    acc_even = jnp.zeros_like(x)
    acc_odd = jnp.zeros_like(x)
    for k in range(num_k):  # statically unrolled (small K)
        d = x - cent[k]
        term = wsum[k] * jnp.exp(scal[k] * (d * d))
        if k % 2 == 0:
            acc_even = acc_even + term
        else:
            acc_odd = acc_odd + term
    o_ref[...] = (acc_even + acc_odd + bias_ref[...]).astype(o_ref.dtype)


def _round_up(x, m):
    return ((x + m - 1) // m) * m


def _target_tile_bytes():
    # Per x-tile f32 byte budget.  x tile + out tile, double buffered, is
    # ~4x this value live in VMEM; stay well under the 32 MiB default scoped
    # VMEM limit and leave headroom on v7x (64 MiB physical per TensorCore).
    try:
        vmem = pltpu.get_tpu_info().vmem_capacity_bytes
    except Exception:
        vmem = 64 << 20  # conservative (v7x) default
    return max(1 << 20, min(6 << 20, vmem // 16))


def _pick_tiling(num_rows, lane_width, target_bytes, min_steps=4):
    # Returns (tile_rows, grid_steps, padded_rows); tile_rows is a multiple of
    # 8 (sublane constraint).  No exact-divisor requirement: rows get padded
    # to tile_rows * grid_steps host-side.
    max_by_vmem = max(8, (target_bytes // (4 * lane_width)) // 8 * 8)
    # Aim for >= min_steps grid steps so that with a "parallel" axis each v7x
    # TensorCore gets >= 2 iterations (keeps per-core prefetch/writeback
    # overlap) while still hiding DMA on single-core chips.
    max_by_grid = max(8, (num_rows // min_steps) // 8 * 8)
    tile0 = min(max_by_vmem, max_by_grid)
    steps = pl.cdiv(num_rows, tile0)
    # Re-balance the tile to minimize row padding for this step count.
    tile_rows = _round_up(pl.cdiv(num_rows, steps), 8)
    return tile_rows, steps, tile_rows * steps


def kan_layer_pallas(x, weights, bias, centers, widths):
    B, D = x.shape
    O, K = weights.shape
    assert bias.shape == (O,)
    assert D == O, "PyTorch broadcasting of `+ bias` requires input_dim == output_dim"

    f32 = jnp.float32
    x = x.astype(f32)

    # Host-side precompute: collapse the O axis and fold the RBF denominator.
    w_sum = jnp.sum(weights.astype(f32), axis=0).reshape(K)            # (K,)
    c_vec = centers.astype(f32).reshape(K)                             # (K,)
    scale = -1.0 / (2.0 * jnp.square(widths.astype(f32).reshape(K)))   # (K,)

    # Lane-dense slab: last dim L = lcm(D, 128) so (a) every store is a
    # full-lane unmasked vst and (b) the bias pattern tiles cleanly along
    # lanes (lane j <-> feature j % D).  All shapes take this path: the
    # flattened input is zero-padded up to a whole number of tiles and the
    # pad is sliced off after the call.
    L = (D * 128) // math.gcd(D, 128)
    n_elems = B * D
    rows = pl.cdiv(n_elems, L)

    tile_rows, steps, rows_pad = _pick_tiling(rows, L, _target_tile_bytes())
    pad = rows_pad * L - n_elems
    x_slab = jnp.pad(x.reshape(-1), (0, pad)).reshape(rows_pad, L)
    bias_slab = jnp.tile(bias.astype(f32), L // D).reshape(1, L)

    smem_spec = pl.BlockSpec(memory_space=pltpu.MemorySpace.SMEM)

    out_slab = pl.pallas_call(
        kan_kernel,
        out_shape=jax.ShapeDtypeStruct((rows_pad, L), f32),
        grid_spec=pltpu.PrefetchScalarGridSpec(
            num_scalar_prefetch=0,
            grid=(steps,),
            in_specs=[
                smem_spec,                                         # w_sum   (K,)
                smem_spec,                                         # centers (K,)
                smem_spec,                                         # scale   (K,)
                pl.BlockSpec((tile_rows, L), lambda i: (i, 0)),    # x slab tile
                pl.BlockSpec((1, L), lambda i: (0, 0)),            # bias slab
            ],
            out_specs=pl.BlockSpec((tile_rows, L), lambda i: (i, 0)),
        ),
        compiler_params=pltpu.CompilerParams(
            dimension_semantics=("parallel",),
        ),
        cost_estimate=pl.CostEstimate(
            flops=5 * n_elems * K + n_elems,
            transcendentals=n_elems * K,
            bytes_accessed=4 * (2 * n_elems + 3 * K + D),
        ),
    )(w_sum, c_vec, scale, x_slab, bias_slab)

    return out_slab.reshape(-1)[:n_elems].reshape(B, D)


def kan_layer_ref(x, weights, bias, centers, widths):
    # Pure-JAX reference mirroring the PyTorch code exactly.
    kernels = jnp.exp(-(x[..., None] - centers) ** 2 / (2.0 * widths ** 2))
    act = jnp.sum(jnp.matmul(kernels, weights.T), axis=-1) + bias
    return act


if __name__ == "__main__":
    key = jax.random.PRNGKey(0)
    k_x1, k_w1, k_b1, k_x2, k_w2, k_b2 = jax.random.split(key, 6)

    # Config 1: clean lane-dense slab (B*D = 2048 -> slab (16, 128), tile
    # (8, 128), grid=(2,)).
    B1, D1, K1 = 64, 32, 10
    x1 = jax.random.normal(k_x1, (B1, D1), dtype=jnp.float32)
    w1 = jax.random.normal(k_w1, (D1, K1), dtype=jnp.float32)
    b1 = jax.random.normal(k_b1, (D1,), dtype=jnp.float32)   # exercise bias tiling
    c1 = jnp.linspace(-1.0, 1.0, K1, dtype=jnp.float32)
    s1 = jnp.ones((K1,), dtype=jnp.float32) * 0.1

    out1 = jax.block_until_ready(kan_layer_pallas(x1, w1, b1, c1, s1))
    ref1 = kan_layer_ref(x1, w1, b1, c1, s1)
    assert out1.shape == (B1, D1)
    assert jnp.allclose(out1, ref1, atol=2e-4, rtol=2e-4), "mismatch vs reference (config 1)"

    # Config 2: awkward shape (D=48 -> L=384, B*D=192 -> padded to 8 rows),
    # exercises the zero-pad path instead of the old masked-store fallback.
    B2, D2, K2 = 4, 48, 7
    x2 = jax.random.normal(k_x2, (B2, D2), dtype=jnp.float32)
    w2 = jax.random.normal(k_w2, (D2, K2), dtype=jnp.float32)
    b2 = jax.random.normal(k_b2, (D2,), dtype=jnp.float32)
    c2 = jnp.linspace(-1.0, 1.0, K2, dtype=jnp.float32)
    s2 = jnp.ones((K2,), dtype=jnp.float32) * 0.1

    out2 = jax.block_until_ready(kan_layer_pallas(x2, w2, b2, c2, s2))
    ref2 = kan_layer_ref(x2, w2, b2, c2, s2)
    assert out2.shape == (B2, D2)
    assert jnp.allclose(out2, ref2, atol=2e-4, rtol=2e-4), "mismatch vs reference (config 2)"

    print("KERNEL_OK")
</pallas_src>

<mosaic_0001>
module attributes {stable_mosaic.version = 11 : i64} {
  func.func @kan_kernel(%arg0: i32, %arg1: memref<10xf32, #tpu.memory_space<smem>>, %arg2: memref<10xf32, #tpu.memory_space<smem>>, %arg3: memref<10xf32, #tpu.memory_space<smem>>, %arg4: memref<8x128xf32, #tpu.memory_space<vmem>>, %arg5: memref<1x128xf32, #tpu.memory_space<vmem>>, %arg6: memref<8x128xf32, #tpu.memory_space<vmem>>) attributes {dimension_semantics = [#tpu.dimension_semantics<parallel>], iteration_bounds = array<i64: 2>, scalar_prefetch = 0 : i64, scratch_operands = 0 : i64, tpu.core_type = #tpu.core_type<tc>, window_params = [{transform_indices = @transform_0, window_bounds = array<i64: 10>}, {transform_indices = @transform_1, window_bounds = array<i64: 10>}, {transform_indices = @transform_2, window_bounds = array<i64: 10>}, {transform_indices = @transform_3, window_bounds = array<i64: 8, 128>}, {pipeline_mode = #tpu.pipeline_mode<synchronous>, transform_indices = @transform_4, window_bounds = array<i64: 1, 128>}, {transform_indices = @transform_5, window_bounds = array<i64: 8, 128>}]} {
    %c0 = arith.constant 0 : index
    %0 = memref.load %arg1[%c0] : memref<10xf32, #tpu.memory_space<smem>>
    %c1 = arith.constant 1 : index
    %1 = memref.load %arg1[%c1] : memref<10xf32, #tpu.memory_space<smem>>
    %c2 = arith.constant 2 : index
    %2 = memref.load %arg1[%c2] : memref<10xf32, #tpu.memory_space<smem>>
    %c3 = arith.constant 3 : index
    %3 = memref.load %arg1[%c3] : memref<10xf32, #tpu.memory_space<smem>>
    %c4 = arith.constant 4 : index
    %4 = memref.load %arg1[%c4] : memref<10xf32, #tpu.memory_space<smem>>
    %c5 = arith.constant 5 : index
    %5 = memref.load %arg1[%c5] : memref<10xf32, #tpu.memory_space<smem>>
    %c6 = arith.constant 6 : index
    %6 = memref.load %arg1[%c6] : memref<10xf32, #tpu.memory_space<smem>>
    %c7 = arith.constant 7 : index
    %7 = memref.load %arg1[%c7] : memref<10xf32, #tpu.memory_space<smem>>
    %c8 = arith.constant 8 : index
    %8 = memref.load %arg1[%c8] : memref<10xf32, #tpu.memory_space<smem>>
    %c9 = arith.constant 9 : index
    %9 = memref.load %arg1[%c9] : memref<10xf32, #tpu.memory_space<smem>>
    %c0_0 = arith.constant 0 : index
    %10 = memref.load %arg2[%c0_0] : memref<10xf32, #tpu.memory_space<smem>>
    %c1_1 = arith.constant 1 : index
    %11 = memref.load %arg2[%c1_1] : memref<10xf32, #tpu.memory_space<smem>>
    %c2_2 = arith.constant 2 : index
    %12 = memref.load %arg2[%c2_2] : memref<10xf32, #tpu.memory_space<smem>>
    %c3_3 = arith.constant 3 : index
    %13 = memref.load %arg2[%c3_3] : memref<10xf32, #tpu.memory_space<smem>>
    %c4_4 = arith.constant 4 : index
    %14 = memref.load %arg2[%c4_4] : memref<10xf32, #tpu.memory_space<smem>>
    %c5_5 = arith.constant 5 : index
    %15 = memref.load %arg2[%c5_5] : memref<10xf32, #tpu.memory_space<smem>>
    %c6_6 = arith.constant 6 : index
    %16 = memref.load %arg2[%c6_6] : memref<10xf32, #tpu.memory_space<smem>>
    %c7_7 = arith.constant 7 : index
    %17 = memref.load %arg2[%c7_7] : memref<10xf32, #tpu.memory_space<smem>>
    %c8_8 = arith.constant 8 : index
    %18 = memref.load %arg2[%c8_8] : memref<10xf32, #tpu.memory_space<smem>>
    %c9_9 = arith.constant 9 : index
    %19 = memref.load %arg2[%c9_9] : memref<10xf32, #tpu.memory_space<smem>>
    %c0_10 = arith.constant 0 : index
    %20 = memref.load %arg3[%c0_10] : memref<10xf32, #tpu.memory_space<smem>>
    %c1_11 = arith.constant 1 : index
    %21 = memref.load %arg3[%c1_11] : memref<10xf32, #tpu.memory_space<smem>>
    %c2_12 = arith.constant 2 : index
    %22 = memref.load %arg3[%c2_12] : memref<10xf32, #tpu.memory_space<smem>>
    %c3_13 = arith.constant 3 : index
    %23 = memref.load %arg3[%c3_13] : memref<10xf32, #tpu.memory_space<smem>>
    %c4_14 = arith.constant 4 : index
    %24 = memref.load %arg3[%c4_14] : memref<10xf32, #tpu.memory_space<smem>>
    %c5_15 = arith.constant 5 : index
    %25 = memref.load %arg3[%c5_15] : memref<10xf32, #tpu.memory_space<smem>>
    %c6_16 = arith.constant 6 : index
    %26 = memref.load %arg3[%c6_16] : memref<10xf32, #tpu.memory_space<smem>>
    %c7_17 = arith.constant 7 : index
    %27 = memref.load %arg3[%c7_17] : memref<10xf32, #tpu.memory_space<smem>>
    %c8_18 = arith.constant 8 : index
    %28 = memref.load %arg3[%c8_18] : memref<10xf32, #tpu.memory_space<smem>>
    %c9_19 = arith.constant 9 : index
    %29 = memref.load %arg3[%c9_19] : memref<10xf32, #tpu.memory_space<smem>>
    %c0_20 = arith.constant 0 : index
    %c0_21 = arith.constant 0 : index
    %30 = vector.load %arg4[%c0_20, %c0_21] : memref<8x128xf32, #tpu.memory_space<vmem>>, vector<8x128xf32>
    %cst = arith.constant 0.000000e+00 : f32
    %31 = vector.broadcast %cst : f32 to vector<8x128xf32>
    %cst_22 = arith.constant 0.000000e+00 : f32
    %32 = vector.broadcast %cst_22 : f32 to vector<8x128xf32>
    %33 = vector.broadcast %10 : f32 to vector<8x128xf32>
    %34 = arith.subf %30, %33 : vector<8x128xf32>
    %35 = arith.mulf %34, %34 : vector<8x128xf32>
    %36 = vector.broadcast %20 : f32 to vector<8x128xf32>
    %37 = arith.mulf %36, %35 : vector<8x128xf32>
    %38 = math.exp %37 : vector<8x128xf32>
    %39 = vector.broadcast %0 : f32 to vector<8x128xf32>
    %40 = arith.mulf %39, %38 : vector<8x128xf32>
    %41 = arith.addf %31, %40 : vector<8x128xf32>
    %42 = vector.broadcast %11 : f32 to vector<8x128xf32>
    %43 = arith.subf %30, %42 : vector<8x128xf32>
    %44 = arith.mulf %43, %43 : vector<8x128xf32>
    %45 = vector.broadcast %21 : f32 to vector<8x128xf32>
    %46 = arith.mulf %45, %44 : vector<8x128xf32>
    %47 = math.exp %46 : vector<8x128xf32>
    %48 = vector.broadcast %1 : f32 to vector<8x128xf32>
    %49 = arith.mulf %48, %47 : vector<8x128xf32>
    %50 = arith.addf %32, %49 : vector<8x128xf32>
    %51 = vector.broadcast %12 : f32 to vector<8x128xf32>
    %52 = arith.subf %30, %51 : vector<8x128xf32>
    %53 = arith.mulf %52, %52 : vector<8x128xf32>
    %54 = vector.broadcast %22 : f32 to vector<8x128xf32>
    %55 = arith.mulf %54, %53 : vector<8x128xf32>
    %56 = math.exp %55 : vector<8x128xf32>
    %57 = vector.broadcast %2 : f32 to vector<8x128xf32>
    %58 = arith.mulf %57, %56 : vector<8x128xf32>
    %59 = arith.addf %41, %58 : vector<8x128xf32>
    %60 = vector.broadcast %13 : f32 to vector<8x128xf32>
    %61 = arith.subf %30, %60 : vector<8x128xf32>
    %62 = arith.mulf %61, %61 : vector<8x128xf32>
    %63 = vector.broadcast %23 : f32 to vector<8x128xf32>
    %64 = arith.mulf %63, %62 : vector<8x128xf32>
    %65 = math.exp %64 : vector<8x128xf32>
    %66 = vector.broadcast %3 : f32 to vector<8x128xf32>
    %67 = arith.mulf %66, %65 : vector<8x128xf32>
    %68 = arith.addf %50, %67 : vector<8x128xf32>
    %69 = vector.broadcast %14 : f32 to vector<8x128xf32>
    %70 = arith.subf %30, %69 : vector<8x128xf32>
    %71 = arith.mulf %70, %70 : vector<8x128xf32>
    %72 = vector.broadcast %24 : f32 to vector<8x128xf32>
    %73 = arith.mulf %72, %71 : vector<8x128xf32>
    %74 = math.exp %73 : vector<8x128xf32>
    %75 = vector.broadcast %4 : f32 to vector<8x128xf32>
    %76 = arith.mulf %75, %74 : vector<8x128xf32>
    %77 = arith.addf %59, %76 : vector<8x128xf32>
    %78 = vector.broadcast %15 : f32 to vector<8x128xf32>
    %79 = arith.subf %30, %78 : vector<8x128xf32>
    %80 = arith.mulf %79, %79 : vector<8x128xf32>
    %81 = vector.broadcast %25 : f32 to vector<8x128xf32>
    %82 = arith.mulf %81, %80 : vector<8x128xf32>
    %83 = math.exp %82 : vector<8x128xf32>
    %84 = vector.broadcast %5 : f32 to vector<8x128xf32>
    %85 = arith.mulf %84, %83 : vector<8x128xf32>
    %86 = arith.addf %68, %85 : vector<8x128xf32>
    %87 = vector.broadcast %16 : f32 to vector<8x128xf32>
    %88 = arith.subf %30, %87 : vector<8x128xf32>
    %89 = arith.mulf %88, %88 : vector<8x128xf32>
    %90 = vector.broadcast %26 : f32 to vector<8x128xf32>
    %91 = arith.mulf %90, %89 : vector<8x128xf32>
    %92 = math.exp %91 : vector<8x128xf32>
    %93 = vector.broadcast %6 : f32 to vector<8x128xf32>
    %94 = arith.mulf %93, %92 : vector<8x128xf32>
    %95 = arith.addf %77, %94 : vector<8x128xf32>
    %96 = vector.broadcast %17 : f32 to vector<8x128xf32>
    %97 = arith.subf %30, %96 : vector<8x128xf32>
    %98 = arith.mulf %97, %97 : vector<8x128xf32>
    %99 = vector.broadcast %27 : f32 to vector<8x128xf32>
    %100 = arith.mulf %99, %98 : vector<8x128xf32>
    %101 = math.exp %100 : vector<8x128xf32>
    %102 = vector.broadcast %7 : f32 to vector<8x128xf32>
    %103 = arith.mulf %102, %101 : vector<8x128xf32>
    %104 = arith.addf %86, %103 : vector<8x128xf32>
    %105 = vector.broadcast %18 : f32 to vector<8x128xf32>
    %106 = arith.subf %30, %105 : vector<8x128xf32>
    %107 = arith.mulf %106, %106 : vector<8x128xf32>
    %108 = vector.broadcast %28 : f32 to vector<8x128xf32>
    %109 = arith.mulf %108, %107 : vector<8x128xf32>
    %110 = math.exp %109 : vector<8x128xf32>
    %111 = vector.broadcast %8 : f32 to vector<8x128xf32>
    %112 = arith.mulf %111, %110 : vector<8x128xf32>
    %113 = arith.addf %95, %112 : vector<8x128xf32>
    %114 = vector.broadcast %19 : f32 to vector<8x128xf32>
    %115 = arith.subf %30, %114 : vector<8x128xf32>
    %116 = arith.mulf %115, %115 : vector<8x128xf32>
    %117 = vector.broadcast %29 : f32 to vector<8x128xf32>
    %118 = arith.mulf %117, %116 : vector<8x128xf32>
    %119 = math.exp %118 : vector<8x128xf32>
    %120 = vector.broadcast %9 : f32 to vector<8x128xf32>
    %121 = arith.mulf %120, %119 : vector<8x128xf32>
    %122 = arith.addf %104, %121 : vector<8x128xf32>
    %123 = arith.addf %113, %122 : vector<8x128xf32>
    %c0_23 = arith.constant 0 : index
    %c0_24 = arith.constant 0 : index
    %124 = vector.load %arg5[%c0_23, %c0_24] : memref<1x128xf32, #tpu.memory_space<vmem>>, vector<1x128xf32>
    %125 = vector.broadcast %124 : vector<1x128xf32> to vector<8x128xf32>
    %126 = arith.addf %123, %125 : vector<8x128xf32>
    %c0_25 = arith.constant 0 : index
    %c0_26 = arith.constant 0 : index
    %127 = vector.load %arg6[%c0_25, %c0_26] : memref<8x128xf32, #tpu.memory_space<vmem>>, vector<8x128xf32>
    tpu.vector_store %arg6[%c0_25, %c0_26], %126 {strides = array<i32>} : memref<8x128xf32, #tpu.memory_space<vmem>>, vector<8x128xf32>,
    return
  }
  func.func @transform_0(%arg0: i32) -> i32 {
    %c0_i32 = arith.constant 0 : i32
    %c0_i32_0 = arith.constant 0 : i32
    return %c0_i32 : i32
  }
  func.func @transform_1(%arg0: i32) -> i32 {
    %c0_i32 = arith.constant 0 : i32
    %c0_i32_0 = arith.constant 0 : i32
    return %c0_i32 : i32
  }
  func.func @transform_2(%arg0: i32) -> i32 {
    %c0_i32 = arith.constant 0 : i32
    %c0_i32_0 = arith.constant 0 : i32
    return %c0_i32 : i32
  }
  func.func @transform_3(%arg0: i32) -> (i32, i32) {
    %c0_i32 = arith.constant 0 : i32
    %c0_i32_0 = arith.constant 0 : i32
    return %arg0, %c0_i32 : i32, i32
  }
  func.func @transform_4(%arg0: i32) -> (i32, i32) {
    %c0_i32 = arith.constant 0 : i32
    %c0_i32_0 = arith.constant 0 : i32
    %c0_i32_1 = arith.constant 0 : i32
    return %c0_i32, %c0_i32_0 : i32, i32
  }
  func.func @transform_5(%arg0: i32) -> (i32, i32) {
    %c0_i32 = arith.constant 0 : i32
    %c0_i32_0 = arith.constant 0 : i32
    return %arg0, %c0_i32 : i32, i32
  }
}

</mosaic_0001>

<llo_original>
// kernel: tpu_custom_call.1
$region0: #{tpu_custom_call.1}
  #allocation0 [shape = 'u32[]', space=smem, size = 0x4, offset = 0x4, fixed_abs, tag = 'smem constant byte address 0x4 - core index']
  #allocation1 [shape = 'u32[144,128]{1,0:T(1,128)}', space=vmem, size = 0x12000, scoped, tag = 'internal scratch']
  %s0 = inlined_call_operand.hbm [shape: f32[10], index: 0, kind: input, shape index: {}]
  %s1 = inlined_call_operand.vmem [shape: f32[10], index: 1, kind: input, shape index: {}]
  %s2 = inlined_call_operand.vmem [shape: f32[10], index: 2, kind: input, shape index: {}]
  %s3 = inlined_call_operand.hbm [shape: f32[16,128], index: 3, kind: input, shape index: {}]
  %s4 = inlined_call_operand.vmem [shape: f32[1,128], index: 4, kind: input, shape index: {}]
  %s5 = inlined_call_operand.hbm [shape: f32[16,128], index: 5, kind: output, shape index: {}]
  %s6 = sld [smem:[#allocation0]]
  $region69: #{tpu_custom_call.1} parent=0
    _
  %s8 = ssub.s32 1, %s6
  %s9 = scalar_select 0, %s8, %s6
  $region1: #{tpu_custom_call.1} parent=0
    #allocation2 [shape = 'u8[512]{0}', space=smem, size = 0x200, scoped, tag = 'input window, operand 0, single buffered']
    #allocation3 [shape = 's32[2]{0}', space=sflag, size = 0x8, scoped, tag = 'scoped memory for tpu_custom_call.1']
    #allocation4 [shape = 's32[2]{0}', space=sflag, size = 0x8, scoped, tag = 'scoped memory for tpu_custom_call.1']
    #allocation5 [shape = 's32[2]{0}', space=sflag, size = 0x8, scoped, tag = 'scoped memory for tpu_custom_call.1']
    #allocation6 [shape = 's32[2]{0}', space=sflag, size = 0x8, scoped, tag = 'scoped memory for tpu_custom_call.1']
    #allocation7 [shape = 'u8[512]{0}', space=smem, size = 0x200, scoped, tag = 'input window, operand 1, single buffered']
    #allocation8 [shape = 'u8[512]{0}', space=smem, size = 0x200, scoped, tag = 'input window, operand 2, single buffered']
    #allocation9 [shape = 's32[1]{0}', space=sflag, size = 0x4, scoped, tag = 'scoped memory for tpu_custom_call.1']
    #allocation10 [shape = 'u8[8192]{0}', space=vmem, size = 0x2000, scoped, tag = 'input window, operand 3']
    #allocation11 [shape = 'u8[8192]{0}', space=vmem, size = 0x2000, scoped, tag = 'output window, operand 0']
    %10 = vsyncpa [#allocation5], 0
    %11 = vsyncpa [#allocation6], 0
    %12 = vsyncpa [#allocation9], 0
    %13 = vsyncpa [#allocation3], 0
    %s14 = scalar_lea.sflag [#allocation3], 1
    %15 = vsyncpa %s14, 0
    %16 = vsyncpa [#allocation4], 0
    %s17 = scalar_lea.sflag [#allocation4], 1
    %18 = vsyncpa %s17, 0
    loop: start=0, step=1, limit=4
    $region2: #{tpu_custom_call.1} parent=1 // loop_pre_header
      _
    $region3: #{tpu_custom_call.1} parent=1 // loop_header
      %s20 = sphi 0, %s24
      %p21 = scmp.ge.s32.totalorder %s20, 4
      %s28 = sphi 0, %s28
      %s30 = sphi 0, %s28
      %s31 = sphi 0, %s30
      %s45 = sphi 0, %s31
      %s49 = sphi 0, %s49
      %s51 = sphi 0, %s49
      %s52 = sphi 0, %s51
      %s66 = sphi 0, %s52
      %s70 = sphi 0, %s70
      %s72 = sphi 0, %s70
      %s73 = sphi 0, %s72
      %s87 = sphi 0, %s73
      %s93 = sphi 0, %s95
      %s96 = sphi 0, %s93
      %s97 = sphi 0, %s96
      %s113 = sphi 0, %s97
      %s117 = sphi 0, %s117
      %s119 = sphi 0, %s117
      %s120 = sphi 0, %s119
      %s134 = sphi 0, %s120
      %s140 = sphi 0, %s142
      %s143 = sphi 0, %s140
      %s144 = sphi 0, %s143
      %s160 = sphi 0, %s144
    $region4: #{tpu_custom_call.1} parent=1 // loop_header_branch
      %23 = sbr.rel (%p21) target = $region8
    $region5: #{tpu_custom_call.1} parent=1 // loop_body
      %s25 = ssub.s32 %s20, 1
      %s26 = ssub.s32 %s20, 2
      %s27 = sadd.s32 %s20, 1
      %s29 = sadd.s32 %s28, 1
      %p32 = scmp.eq.s32.totalorder %s20, 1
      %p33 = scmp.ne.s32.totalorder %s28, %s30
      %p34 = scmp.eq.s32.totalorder %s20, 0
      %p35 = por %p33, %p34
      %p36 = scmp.ne.s32.totalorder %s28, %s30
      %p37 = scmp.eq.s32.totalorder %s25, 1
      %p38 = por %p36, %p37
      %p39 = scmp.ne.s32.totalorder %s30, %s31
      %p40 = scmp.eq.s32.totalorder %s25, 0
      %p41 = por %p39, %p40
      %p42 = scmp.ne.s32.totalorder %s30, %s31
      %p43 = scmp.eq.s32.totalorder %s26, 1
      %p44 = por %p42, %p43
      %p46 = scmp.ne.s32.totalorder %s31, %s45
      %p47 = scmp.eq.s32.totalorder %s26, 0
      %p48 = por %p46, %p47
      %s50 = sadd.s32 %s49, 1
      %p53 = scmp.eq.s32.totalorder %s20, 1
      %p54 = scmp.ne.s32.totalorder %s49, %s51
      %p55 = scmp.eq.s32.totalorder %s20, 0
      %p56 = por %p54, %p55
      %p57 = scmp.ne.s32.totalorder %s49, %s51
      %p58 = scmp.eq.s32.totalorder %s25, 1
      %p59 = por %p57, %p58
      %p60 = scmp.ne.s32.totalorder %s51, %s52
      %p61 = scmp.eq.s32.totalorder %s25, 0
      %p62 = por %p60, %p61
      %p63 = scmp.ne.s32.totalorder %s51, %s52
      %p64 = scmp.eq.s32.totalorder %s26, 1
      %p65 = por %p63, %p64
      %p67 = scmp.ne.s32.totalorder %s52, %s66
      %p68 = scmp.eq.s32.totalorder %s26, 0
      %p69 = por %p67, %p68
      %s71 = sadd.s32 %s70, 1
      %p74 = scmp.eq.s32.totalorder %s20, 1
      %p75 = scmp.ne.s32.totalorder %s70, %s72
      %p76 = scmp.eq.s32.totalorder %s20, 0
      %p77 = por %p75, %p76
      %p78 = scmp.ne.s32.totalorder %s70, %s72
      %p79 = scmp.eq.s32.totalorder %s25, 1
      %p80 = por %p78, %p79
      %p81 = scmp.ne.s32.totalorder %s72, %s73
      %p82 = scmp.eq.s32.totalorder %s25, 0
      %p83 = por %p81, %p82
      %p84 = scmp.ne.s32.totalorder %s72, %s73
      %p85 = scmp.eq.s32.totalorder %s26, 1
      %p86 = por %p84, %p85
      %p88 = scmp.ne.s32.totalorder %s73, %s87
      %p89 = scmp.eq.s32.totalorder %s26, 0
      %p90 = por %p88, %p89
      %s91 = ssub.s32 %s20, %s27
      %p92 = scmp.eq.s32.totalorder %s91, 0
      %s94 = sadd.s32 %s93, 1
      %s95 = scalar_select %p92, %s93, %s94
      %p98 = pneg %p92
      %p99 = scmp.eq.s32.totalorder %s20, 1
      %p100 = por %p98, %p99
      %p101 = scmp.ne.s32.totalorder %s93, %s96
      %p102 = scmp.eq.s32.totalorder %s20, 0
      %p103 = por %p101, %p102
      %p104 = scmp.ne.s32.totalorder %s93, %s96
      %p105 = scmp.eq.s32.totalorder %s25, 1
      %p106 = por %p104, %p105
      %p107 = scmp.ne.s32.totalorder %s96, %s97
      %p108 = scmp.eq.s32.totalorder %s25, 0
      %p109 = por %p107, %p108
      %p110 = scmp.ne.s32.totalorder %s96, %s97
      %p111 = scmp.eq.s32.totalorder %s26, 1
      %p112 = por %p110, %p111
      %p114 = scmp.ne.s32.totalorder %s97, %s113
      %p115 = scmp.eq.s32.totalorder %s26, 0
      %p116 = por %p114, %p115
      %s118 = sadd.s32 %s117, 1
      %p121 = scmp.eq.s32.totalorder %s20, 1
      %p122 = scmp.ne.s32.totalorder %s117, %s119
      %p123 = scmp.eq.s32.totalorder %s20, 0
      %p124 = por %p122, %p123
      %p125 = scmp.ne.s32.totalorder %s117, %s119
      %p126 = scmp.eq.s32.totalorder %s25, 1
      %p127 = por %p125, %p126
      %p128 = scmp.ne.s32.totalorder %s119, %s120
      %p129 = scmp.eq.s32.totalorder %s25, 0
      %p130 = por %p128, %p129
      %p131 = scmp.ne.s32.totalorder %s119, %s120
      %p132 = scmp.eq.s32.totalorder %s26, 1
      %p133 = por %p131, %p132
      %p135 = scmp.ne.s32.totalorder %s120, %s134
      %p136 = scmp.eq.s32.totalorder %s26, 0
      %p137 = por %p135, %p136
      %s138 = ssub.s32 %s20, %s27
      %p139 = scmp.eq.s32.totalorder %s138, 0
      %s141 = sadd.s32 %s140, 1
      %s142 = scalar_select %p139, %s140, %s141
      %p145 = pneg %p139
      %p146 = scmp.eq.s32.totalorder %s20, 1
      %p147 = por %p145, %p146
      %p148 = scmp.ne.s32.totalorder %s140, %s143
      %p149 = scmp.eq.s32.totalorder %s20, 0
      %p150 = por %p148, %p149
      %p151 = scmp.ne.s32.totalorder %s140, %s143
      %p152 = scmp.eq.s32.totalorder %s25, 1
      %p153 = por %p151, %p152
      %p154 = scmp.ne.s32.totalorder %s143, %s144
      %p155 = scmp.eq.s32.totalorder %s25, 0
      %p156 = por %p154, %p155
      %p157 = scmp.ne.s32.totalorder %s143, %s144
      %p158 = scmp.eq.s32.totalorder %s26, 1
      %p159 = por %p157, %p158
      %p161 = scmp.ne.s32.totalorder %s144, %s160
      %p162 = scmp.eq.s32.totalorder %s26, 0
      %p163 = por %p161, %p162
      %p164 = scmp.le.s32.totalorder 1, %s20
      %p165 = scmp.lt.s32.totalorder %s20, 3
      %p166 = pnand %p164, %p165
      %p167 = pneg %p166
      // Predicated region
      $region9: #{tpu_custom_call.1} parent=5 // pred_check
        _
      $region10: #{tpu_custom_call.1} parent=5 // pred_check_branch
        %169 = sbr.rel (%p166) target = $region12
      $region11: #{tpu_custom_call.1} parent=5 // pred_region
        %s170 = ssub.s32 %s20, 1
        // Predicated region
        $region13: #{tpu_custom_call.1} parent=11 // pred_check
          %p171 = pneg %p41
        $region14: #{tpu_custom_call.1} parent=11 // pred_check_branch
          %173 = sbr.rel (%p171) target = $region16
        $region15: #{tpu_custom_call.1} parent=11 // pred_region
          %s175 = ssub.s32 16, 16
          %176 = vsyncadd [#allocation5], %s175
          %179 = dma.hbm_to_smem %s0, 16, [#allocation2], [#allocation5]
        $region16: #{tpu_custom_call.1} parent=11 // pred_fallthru
          _
        // Predicated region
        $region17: #{tpu_custom_call.1} parent=11 // pred_check
          %p180 = pneg %p62
        $region18: #{tpu_custom_call.1} parent=11 // pred_check_branch
          %182 = sbr.rel (%p180) target = $region20
        $region19: #{tpu_custom_call.1} parent=11 // pred_region
          %s184 = ssub.s32 16, 16
          %185 = vsyncadd [#allocation6], %s184
          %s187 = sshll.u32 %s1, 4
          %s188 = int_to_ptr.vmem [resolvable:$true] %s187
          %190 = dma.vmem_to_smem %s188, 16, [#allocation7], [#allocation6]
        $region20: #{tpu_custom_call.1} parent=11 // pred_fallthru
          _
        // Predicated region
        $region21: #{tpu_custom_call.1} parent=11 // pred_check
          %p191 = pneg %p83
        $region22: #{tpu_custom_call.1} parent=11 // pred_check_branch
          %193 = sbr.rel (%p191) target = $region24
        $region23: #{tpu_custom_call.1} parent=11 // pred_region
          %s195 = ssub.s32 16, 16
          %196 = vsyncadd [#allocation9], %s195
          %s198 = sshll.u32 %s2, 4
          %s199 = int_to_ptr.vmem [resolvable:$true] %s198
          %201 = dma.vmem_to_smem %s199, 16, [#allocation8], [#allocation9]
        $region24: #{tpu_custom_call.1} parent=11 // pred_fallthru
          _
        // Predicated region
        $region25: #{tpu_custom_call.1} parent=11 // pred_check
          %p202 = pneg %p130
        $region26: #{tpu_custom_call.1} parent=11 // pred_check_branch
          %204 = sbr.rel (%p202) target = $region28
        $region27: #{tpu_custom_call.1} parent=11 // pred_region
          _
        $region28: #{tpu_custom_call.1} parent=11 // pred_fallthru
          _
      $region12: #{tpu_custom_call.1} parent=5 // pred_fallthru
        _
      %p205 = scmp.lt.s32.totalorder %s20, 2
      // Predicated region
      $region29: #{tpu_custom_call.1} parent=5 // pred_check
        %p206 = pneg %p205
      $region30: #{tpu_custom_call.1} parent=5 // pred_check_branch
        %208 = sbr.rel (%p206) target = $region32
      $region31: #{tpu_custom_call.1} parent=5 // pred_region
        // Predicated region
        $region33: #{tpu_custom_call.1} parent=31 // pred_check
          %p209 = pneg %p103
        $region34: #{tpu_custom_call.1} parent=31 // pred_check_branch
          %211 = sbr.rel (%p209) target = $region36
        $region35: #{tpu_custom_call.1} parent=31 // pred_region
          %s212 = sand.u32 %s93, 1
          %s213 = scalar_lea.sflag [#allocation3], %s212
          %s214 = sand.u32 %s93, 1
          %s215 = smul.addr %s214, 8
          %s216 = scalar_lea.vmem [#allocation10], %s215
          %s218 = ssub.s32 128, 128
          %219 = vsyncadd %s213, %s218
          %s220 = smul.addr %s20, 128
          %s221 = scalar_lea.hbm %s3, %s220
          %s223 = sshll.u32 %s216, 4
          %s224 = int_to_ptr.vmem [resolvable:$true] %s223
          %226 = dma.hbm_to_vmem [thread:$0]  %s221, 128, %s224, %s213
        $region36: #{tpu_custom_call.1} parent=31 // pred_fallthru
          _
      $region32: #{tpu_custom_call.1} parent=5 // pred_fallthru
        _
      %p227 = scmp.le.s32.totalorder 1, %s20
      %p228 = scmp.lt.s32.totalorder %s20, 3
      %p229 = pnand %p227, %p228
      %p230 = pneg %p229
      // Predicated region
      $region37: #{tpu_custom_call.1} parent=5 // pred_check
        _
      $region38: #{tpu_custom_call.1} parent=5 // pred_check_branch
        %232 = sbr.rel (%p229) target = $region40
      $region39: #{tpu_custom_call.1} parent=5 // pred_region
        %s233 = ssub.s32 %s20, 1
        // Predicated region
        $region41: #{tpu_custom_call.1} parent=39 // pred_check
          %p234 = pneg %p41
        $region42: #{tpu_custom_call.1} parent=39 // pred_check_branch
          %236 = sbr.rel (%p234) target = $region44
        $region43: #{tpu_custom_call.1} parent=39 // pred_region
          %237 = dma.done [#allocation5], 16
        $region44: #{tpu_custom_call.1} parent=39 // pred_fallthru
          _
        // Predicated region
        $region45: #{tpu_custom_call.1} parent=39 // pred_check
          %p238 = pneg %p62
        $region46: #{tpu_custom_call.1} parent=39 // pred_check_branch
          %240 = sbr.rel (%p238) target = $region48
        $region47: #{tpu_custom_call.1} parent=39 // pred_region
          %241 = dma.done [#allocation6], 16
        $region48: #{tpu_custom_call.1} parent=39 // pred_fallthru
          _
        // Predicated region
        $region49: #{tpu_custom_call.1} parent=39 // pred_check
          %p242 = pneg %p83
        $region50: #{tpu_custom_call.1} parent=39 // pred_check_branch
          %244 = sbr.rel (%p242) target = $region52
        $region51: #{tpu_custom_call.1} parent=39 // pred_region
          %245 = dma.done [#allocation9], 16
        $region52: #{tpu_custom_call.1} parent=39 // pred_fallthru
          _
        %s246 = sand.u32 %s96, 1
        %s247 = scalar_lea.sflag [#allocation3], %s246
        %s248 = sand.u32 %s96, 1
        %s249 = smul.addr %s248, 8
        %s250 = scalar_lea.vmem [#allocation10], %s249
        // Predicated region
        $region53: #{tpu_custom_call.1} parent=39 // pred_check
          %p251 = pneg %p109
        $region54: #{tpu_custom_call.1} parent=39 // pred_check_branch
          %253 = sbr.rel (%p251) target = $region56
        $region55: #{tpu_custom_call.1} parent=39 // pred_region
          %254 = dma.done %s247, 128
        $region56: #{tpu_custom_call.1} parent=39 // pred_fallthru
          _
        %255 = sfence
        %p256 = pneg %p41
        %p257 = pneg %p38
        %p258 = pneg %p62
        %p259 = pneg %p59
        %p260 = pneg %p83
        %p261 = pneg %p80
        %s262 = sand.u32 %s96, 1
        %s263 = scalar_lea.sflag [#allocation3], %s262
        %s264 = sand.u32 %s96, 1
        %s265 = smul.addr %s264, 8
        %s266 = scalar_lea.vmem [#allocation10], %s265
        %p267 = pneg %p109
        %p268 = pneg %p106
        %p269 = pneg %p130
        %p270 = pneg %p127
        %p271 = pneg %p156
        %p272 = pneg %p153
        %s273 = sand.u32 %s143, 1
        %s274 = scalar_lea.sflag [#allocation4], %s273
        %s275 = sand.u32 %s143, 1
        %s276 = smul.addr %s275, 8
        %s277 = scalar_lea.vmem [#allocation11], %s276
        %s278 = sld [smem:[#allocation2]]
        %s279 = sld [smem:[#allocation2 + $0x1]]
        %s280 = sld [smem:[#allocation2 + $0x2]]
        %s281 = sld [smem:[#allocation2 + $0x3]]
        %s282 = sld [smem:[#allocation2 + $0x4]]
        %s283 = sld [smem:[#allocation2 + $0x5]]
        %s284 = sld [smem:[#allocation2 + $0x6]]
        %s285 = sld [smem:[#allocation2 + $0x7]]
        %s286 = sld [smem:[#allocation2 + $0x8]]
        %s287 = sld [smem:[#allocation2 + $0x9]]
        %s288 = sld [smem:[#allocation7]]
        %s289 = sld [smem:[#allocation7 + $0x1]]
        %s290 = sld [smem:[#allocation7 + $0x2]]
        %s291 = sld [smem:[#allocation7 + $0x3]]
        %s292 = sld [smem:[#allocation7 + $0x4]]
        %s293 = sld [smem:[#allocation7 + $0x5]]
        %s294 = sld [smem:[#allocation7 + $0x6]]
        %s295 = sld [smem:[#allocation7 + $0x7]]
        %s296 = sld [smem:[#allocation7 + $0x8]]
        %s297 = sld [smem:[#allocation7 + $0x9]]
        %s298 = sld [smem:[#allocation8]]
        %s299 = sld [smem:[#allocation8 + $0x1]]
        %s300 = sld [smem:[#allocation8 + $0x2]]
        %s301 = sld [smem:[#allocation8 + $0x3]]
        %s302 = sld [smem:[#allocation8 + $0x4]]
        %s303 = sld [smem:[#allocation8 + $0x5]]
        %s304 = sld [smem:[#allocation8 + $0x6]]
        %s305 = sld [smem:[#allocation8 + $0x7]]
        %s306 = sld [smem:[#allocation8 + $0x8]]
        %s307 = sld [smem:[#allocation8 + $0x9]]
        %v308 = vld [vmem:[%s250] sm:$0xff]
        %v309 = vstv %s288
        %v310 = vsub.f32 %v308, %v309
        %v311 = vmul.f32 %v310, %v310
        %v312 = vstv %s298
        %v313 = vmul.f32 %v312, %v311
        %v314 = vmul.f32 %v313, 1.442695
        %v315 = vpow.pop %v314
        %v316 = vstv %s278
        %v317 = vmul.f32 %v316, %v315
        %v318 = vadd.f32 %v317, 0.0
        %v319 = vstv %s289
        %v320 = vsub.f32 %v308, %v319
        %v321 = vmul.f32 %v320, %v320
        %v322 = vstv %s299
        %v323 = vmul.f32 %v322, %v321
        %v324 = vmul.f32 %v323, 1.442695
        %v325 = vpow.pop %v324
        %v326 = vstv %s279
        %v327 = vmul.f32 %v326, %v325
        %v328 = vadd.f32 %v327, 0.0
        %v329 = vstv %s290
        %v330 = vsub.f32 %v308, %v329
        %v331 = vmul.f32 %v330, %v330
        %v332 = vstv %s300
        %v333 = vmul.f32 %v332, %v331
        %v334 = vmul.f32 %v333, 1.442695
        %v335 = vpow.pop %v334
        %v336 = vstv %s280
        %v337 = vmul.f32 %v336, %v335
        %v338 = vadd.f32 %v318, %v337
        %v339 = vstv %s291
        %v340 = vsub.f32 %v308, %v339
        %v341 = vmul.f32 %v340, %v340
        %v342 = vstv %s301
        %v343 = vmul.f32 %v342, %v341
        %v344 = vmul.f32 %v343, 1.442695
        %v345 = vpow.pop %v344
        %v346 = vstv %s281
        %v347 = vmul.f32 %v346, %v345
        %v348 = vadd.f32 %v328, %v347
        %v349 = vstv %s292
        %v350 = vsub.f32 %v308, %v349
        %v351 = vmul.f32 %v350, %v350
        %v352 = vstv %s302
        %v353 = vmul.f32 %v352, %v351
        %v354 = vmul.f32 %v353, 1.442695
        %v355 = vpow.pop %v354
        %v356 = vstv %s282
        %v357 = vmul.f32 %v356, %v355
        %v358 = vadd.f32 %v338, %v357
        %v359 = vstv %s293
        %v360 = vsub.f32 %v308, %v359
        %v361 = vmul.f32 %v360, %v360
        %v362 = vstv %s303
        %v363 = vmul.f32 %v362, %v361
        %v364 = vmul.f32 %v363, 1.442695
        %v365 = vpow.pop %v364
        %v366 = vstv %s283
        %v367 = vmul.f32 %v366, %v365
        %v368 = vadd.f32 %v348, %v367
        %v369 = vstv %s294
        %v370 = vsub.f32 %v308, %v369
        %v371 = vmul.f32 %v370, %v370
        %v372 = vstv %s304
        %v373 = vmul.f32 %v372, %v371
        %v374 = vmul.f32 %v373, 1.442695
        %v375 = vpow.pop %v374
        %v376 = vstv %s284
        %v377 = vmul.f32 %v376, %v375
        %v378 = vadd.f32 %v358, %v377
        %v379 = vstv %s295
        %v380 = vsub.f32 %v308, %v379
        %v381 = vmul.f32 %v380, %v380
        %v382 = vstv %s305
        %v383 = vmul.f32 %v382, %v381
        %v384 = vmul.f32 %v383, 1.442695
        %v385 = vpow.pop %v384
        %v386 = vstv %s285
        %v387 = vmul.f32 %v386, %v385
        %v388 = vadd.f32 %v368, %v387
        %v389 = vstv %s296
        %v390 = vsub.f32 %v308, %v389
        %v391 = vmul.f32 %v390, %v390
        %v392 = vstv %s306
        %v393 = vmul.f32 %v392, %v391
        %v394 = vmul.f32 %v393, 1.442695
        %v395 = vpow.pop %v394
        %v396 = vstv %s286
        %v397 = vmul.f32 %v396, %v395
        %v398 = vadd.f32 %v378, %v397
        %v399 = vstv %s297
        %v400 = vsub.f32 %v308, %v399
        %v401 = vmul.f32 %v400, %v400
        %v402 = vstv %s307
        %v403 = vmul.f32 %v402, %v401
        %v404 = vmul.f32 %v403, 1.442695
        %v405 = vpow.pop %v404
        %v406 = vstv %s287
        %v407 = vmul.f32 %v406, %v405
        %v408 = vadd.f32 %v388, %v407
        %v409 = vadd.f32 %v398, %v408
        %v410 = vld [vmem:[%s4] sm:$0x1]
        %v412 = vlaneseq
        %v413 = vshrl.u32 %v412, 7
        %v414 = vsub.s32 0, %v413
        %v415 = vrot.slane %v410, %v414
        %v417 = vadd.f32 %v409, %v415
        %418 = vst [vmem:[%s277] sm:$0xff] %v417
        %s419 = sand.u32 %s143, 1
        %s420 = scalar_lea.sflag [#allocation4], %s419
        %s421 = sand.u32 %s143, 1
        %s422 = smul.addr %s421, 8
        %s423 = scalar_lea.vmem [#allocation11], %s422
        // Predicated region
        $region57: #{tpu_custom_call.1} parent=39 // pred_check
          %p424 = pneg %p153
        $region58: #{tpu_custom_call.1} parent=39 // pred_check_branch
          %426 = sbr.rel (%p424) target = $region60
        $region59: #{tpu_custom_call.1} parent=39 // pred_region
          %s428 = ssub.s32 128, 128
          %429 = vsyncadd %s420, %s428
          %s430 = smul.addr %s25, 128
          %s431 = scalar_lea.hbm %s5, %s430
          %s433 = sshll.u32 %s423, 4
          %s434 = int_to_ptr.vmem [resolvable:$true] %s433
          %436 = dma.vmem_to_hbm [thread:$0]  %s434, 128, %s431, %s420
        $region60: #{tpu_custom_call.1} parent=39 // pred_fallthru
          _
      $region40: #{tpu_custom_call.1} parent=5 // pred_fallthru
        _
      %p437 = scmp.le.s32.totalorder 2, %s20
      // Predicated region
      $region61: #{tpu_custom_call.1} parent=5 // pred_check
        %p438 = pneg %p437
      $region62: #{tpu_custom_call.1} parent=5 // pred_check_branch
        %440 = sbr.rel (%p438) target = $region64
      $region63: #{tpu_custom_call.1} parent=5 // pred_region
        %s441 = ssub.s32 %s20, 2
        // Predicated region
        $region65: #{tpu_custom_call.1} parent=63 // pred_check
          %p442 = pneg %p159
        $region66: #{tpu_custom_call.1} parent=63 // pred_check_branch
          %444 = sbr.rel (%p442) target = $region68
        $region67: #{tpu_custom_call.1} parent=63 // pred_region
          %s445 = sand.u32 %s144, 1
          %s446 = scalar_lea.sflag [#allocation4], %s445
          %s447 = sand.u32 %s144, 1
          %s448 = smul.addr %s447, 8
          %s449 = scalar_lea.vmem [#allocation11], %s448
          %450 = dma.done %s446, 128
        $region68: #{tpu_custom_call.1} parent=63 // pred_fallthru
          _
      $region64: #{tpu_custom_call.1} parent=5 // pred_fallthru
        _
    $region6: #{tpu_custom_call.1} parent=1 // loop_footer
      %s24 = sadd.s32 1, %s20
    $region7: #{tpu_custom_call.1} parent=1 // loop_footer_branch
      %19 = sbr.rel target = $region3
    $region8: #{tpu_custom_call.1} parent=1 // loop_exit
      _
    %451 = vsyncpa [#allocation3], 1
    %s452 = scalar_lea.sflag [#allocation3], 1
    %453 = vsyncpa %s452, 1
    %454 = vsyncpa [#allocation4], 1
    %s455 = scalar_lea.sflag [#allocation4], 1
    %456 = vsyncpa %s455, 1
    %457 = vsyncpa [#allocation5], 1
    %s458 = scalar_lea.sflag [#allocation5], 1
    %459 = vsyncpa %s458, 1
    %460 = vsyncpa [#allocation6], 1
    %s461 = scalar_lea.sflag [#allocation6], 1
    %462 = vsyncpa %s461, 1
    %463 = vsyncpa [#allocation9], 1

</llo_original>
